<compile_context>
chip_gen: v6e
topology: v6e:2x2x1
jax: 0.10.0
libtpu: 0.0.40
codegen_flags: <defaults>
</compile_context>

<pallas_src>
import functools

import jax
import jax.numpy as jnp
from jax.experimental import pallas as pl
from jax.experimental.pallas import tpu as pltpu


# ---------------------------------------------------------------------------
# Model hyper-parameters (small, deterministic, consistent with a TextCNN head)
# ---------------------------------------------------------------------------
BATCH = 2
SEQ = 16
HIDDEN = 32
KERNEL_SIZES = (2, 3, 4)
NUM_FILTERS = 8
NUM_CLASSES = 5

K_MAX = max(KERNEL_SIZES)                       # 4
KH = K_MAX * HIDDEN                             # 128 (im2col contraction dim)
F_TOTAL = len(KERNEL_SIZES) * NUM_FILTERS       # 24
F_PAD = 128                                     # lane-dense conv-feature dim
C_PAD = 128                                     # lane-dense logits dim


def _textcnn_fused_kernel(xcol_ref, w_ref, b_ref, mask_ref, wfc_ref, bfc_ref,
                          out_ref, *, batch, seq):
    """Fused conv (one im2col matmul) + bias + ReLU + mask + max-pool + FC."""
    # One MXU matmul covers all three conv kernel sizes: [B*S, KH] @ [KH, F_PAD].
    acc = jnp.dot(xcol_ref[...], w_ref[...],
                  preferred_element_type=jnp.float32)
    # Bias, ReLU, then zero out rows that are past the valid conv output length
    # for each filter group.  ReLU output >= 0, so zeroed rows never win the max.
    acc = jnp.maximum(acc + b_ref[...], 0.0) * mask_ref[...]
    # Max-pool over time per batch element.
    pooled = jnp.max(acc.reshape(batch, seq, F_PAD), axis=1)        # [B, F_PAD]
    # Classifier: second MXU matmul; lane-dense [B, C_PAD] store.
    out_ref[...] = (jnp.dot(pooled, wfc_ref[...],
                            preferred_element_type=jnp.float32) + bfc_ref[...])


@jax.jit
def bert_textcnn_forward(x, params):
    """x: [B, S, H] float32 (BERT hidden states).  Returns logits [B, C]."""
    b, s, h = x.shape

    # --- wrapper-side packing (plain XLA, traced once under jit) -----------
    # im2col unfold: x_col[b, s, d*H:(d+1)*H] = x[b, s+d, :] (zero past S).
    xp = jnp.pad(x, ((0, 0), (0, K_MAX - 1), (0, 0)))
    x_col = jnp.concatenate([xp[:, d:d + s, :] for d in range(K_MAX)], axis=-1)
    x_col = x_col.reshape(b * s, K_MAX * h)                         # [B*S, KH]

    # Fused zero-padded conv weight slab [KH, F_PAD], bias [1, F_PAD],
    # and per-(row, filter-group) validity mask [B*S, F_PAD].
    w_slab = jnp.zeros((K_MAX * h, F_PAD), jnp.float32)
    b_slab = jnp.zeros((1, F_PAD), jnp.float32)
    mask_cols = []
    for i, k in enumerate(KERNEL_SIZES):
        wk = params[f'w{k}'].reshape(k * h, NUM_FILTERS)            # [k*H, F]
        w_slab = w_slab.at[:k * h,
                           i * NUM_FILTERS:(i + 1) * NUM_FILTERS].set(wk)
        b_slab = b_slab.at[0, i * NUM_FILTERS:(i + 1) * NUM_FILTERS].set(
            params[f'b{k}'][0])
        valid = (jnp.arange(s) <= s - k).astype(jnp.float32)        # [S]
        mask_cols.append(jnp.broadcast_to(valid[:, None], (s, NUM_FILTERS)))
    mask = jnp.concatenate(mask_cols, axis=1)                       # [S, 3F]
    mask = jnp.pad(mask, ((0, 0), (0, F_PAD - F_TOTAL)))            # [S, F_PAD]
    mask = jnp.broadcast_to(mask[None], (b, s, F_PAD)).reshape(b * s, F_PAD)

    # Lane-padded classifier weights.
    wfc_pad = jnp.zeros((F_PAD, C_PAD), jnp.float32).at[
        :F_TOTAL, :NUM_CLASSES].set(params['wfc'])
    bfc_pad = jnp.zeros((1, C_PAD), jnp.float32).at[
        0, :NUM_CLASSES].set(params['bfc'][0])

    # --- single-invocation Pallas call (everything resident in VMEM) -------
    kernel = functools.partial(_textcnn_fused_kernel, batch=b, seq=s)
    vmem = pl.BlockSpec(memory_space=pltpu.MemorySpace.VMEM)
    logits_pad = pl.pallas_call(
        kernel,
        out_shape=jax.ShapeDtypeStruct((b, C_PAD), jnp.float32),
        in_specs=[vmem] * 6,
        out_specs=vmem,
    )(x_col, w_slab, b_slab, mask, wfc_pad, bfc_pad)
    return logits_pad[:, :NUM_CLASSES]


def init_params(key):
    """Deterministic parameter init matching the Conv2d/Linear shapes."""
    keys = jax.random.split(key, 8)
    params = {}
    for i, k in enumerate(KERNEL_SIZES):
        # PyTorch Conv2d weight is [F, 1, k, H]; stored here as [k, H, F].
        params[f'w{k}'] = 0.02 * jax.random.normal(
            keys[2 * i], (k, HIDDEN, NUM_FILTERS), jnp.float32)
        params[f'b{k}'] = 0.01 * jax.random.normal(
            keys[2 * i + 1], (1, NUM_FILTERS), jnp.float32)
    params['wfc'] = 0.02 * jax.random.normal(
        keys[6], (F_TOTAL, NUM_CLASSES), jnp.float32)
    params['bfc'] = 0.01 * jax.random.normal(
        keys[7], (1, NUM_CLASSES), jnp.float32)
    return params


def _reference(x, params):
    """Pure-JAX reference (per-k conv + ReLU + max-pool + concat + FC)."""
    pooled_parts = []
    for k in KERNEL_SIZES:
        w, bias = params[f'w{k}'], params[f'b{k}']
        s_out = x.shape[1] - k + 1
        acc = sum(jnp.einsum('bsh,hf->bsf', x[:, d:d + s_out, :], w[d])
                  for d in range(k))
        acc = jnp.maximum(acc + bias[None, :, :], 0.0)
        pooled_parts.append(jnp.max(acc, axis=1))
    pooled = jnp.concatenate(pooled_parts, axis=-1)
    return pooled @ params['wfc'] + params['bfc']


if __name__ == "__main__":
    key = jax.random.PRNGKey(0)
    kx, kp = jax.random.split(key)
    x = jax.random.normal(kx, (BATCH, SEQ, HIDDEN), jnp.float32)
    params = init_params(kp)

    logits = bert_textcnn_forward(x, params)
    jax.block_until_ready(logits)

    ref = _reference(x, params)
    assert logits.shape == (BATCH, NUM_CLASSES)
    assert jnp.allclose(logits, ref, atol=1e-4, rtol=1e-4)
    print("KERNEL_OK")
</pallas_src>

<mosaic_0001>
module attributes {stable_mosaic.version = 11 : i64} {
  func.func @_textcnn_fused_kernel(%arg0: memref<32x128xf32, #tpu.memory_space<vmem>>, %arg1: memref<128x128xf32, #tpu.memory_space<vmem>>, %arg2: memref<1x128xf32, #tpu.memory_space<vmem>>, %arg3: memref<32x128xf32, #tpu.memory_space<vmem>>, %arg4: memref<128x128xf32, #tpu.memory_space<vmem>>, %arg5: memref<1x128xf32, #tpu.memory_space<vmem>>, %arg6: memref<2x128xf32, #tpu.memory_space<vmem>>) attributes {dimension_semantics = [], scalar_prefetch = 0 : i64, scratch_operands = 0 : i64, tpu.core_type = #tpu.core_type<tc>} {
    %c0 = arith.constant 0 : index
    %c0_0 = arith.constant 0 : index
    %0 = vector.load %arg0[%c0, %c0_0] : memref<32x128xf32, #tpu.memory_space<vmem>>, vector<32x128xf32>
    %c0_1 = arith.constant 0 : index
    %c0_2 = arith.constant 0 : index
    %1 = vector.load %arg1[%c0_1, %c0_2] : memref<128x128xf32, #tpu.memory_space<vmem>>, vector<128x128xf32>
    %cst = arith.constant dense<0.000000e+00> : vector<32x128xf32>
    %2 = tpu.matmul %0, %1, %cst {dimension_numbers = #tpu.dot_dimension_numbers<[1], [0], [0], [1], [0, 0, 1, 1], [], []>} : vector<32x128xf32>, vector<128x128xf32>, vector<32x128xf32> -> vector<32x128xf32>
    %c0_3 = arith.constant 0 : index
    %c0_4 = arith.constant 0 : index
    %3 = vector.load %arg2[%c0_3, %c0_4] : memref<1x128xf32, #tpu.memory_space<vmem>>, vector<1x128xf32>
    %4 = vector.broadcast %3 : vector<1x128xf32> to vector<32x128xf32>
    %5 = arith.addf %2, %4 : vector<32x128xf32>
    %cst_5 = arith.constant 0.000000e+00 : f32
    %6 = vector.broadcast %cst_5 : f32 to vector<32x128xf32>
    %7 = arith.maximumf %5, %6 : vector<32x128xf32>
    %c0_6 = arith.constant 0 : index
    %c0_7 = arith.constant 0 : index
    %8 = vector.load %arg3[%c0_6, %c0_7] : memref<32x128xf32, #tpu.memory_space<vmem>>, vector<32x128xf32>
    %9 = arith.mulf %7, %8 : vector<32x128xf32>
    %10 = vector.shape_cast %9 : vector<32x128xf32> to vector<2x16x128xf32>
    %cst_8 = arith.constant dense<0xFF800000> : vector<2x128xf32>
    %11 = vector.multi_reduction <maximumf>, %10, %cst_8 [1] : vector<2x16x128xf32> to vector<2x128xf32>
    %c0_9 = arith.constant 0 : index
    %c0_10 = arith.constant 0 : index
    %12 = vector.load %arg4[%c0_9, %c0_10] : memref<128x128xf32, #tpu.memory_space<vmem>>, vector<128x128xf32>
    %cst_11 = arith.constant dense<0.000000e+00> : vector<2x128xf32>
    %13 = tpu.matmul %11, %12, %cst_11 {dimension_numbers = #tpu.dot_dimension_numbers<[1], [0], [0], [1], [0, 0, 1, 1], [], []>} : vector<2x128xf32>, vector<128x128xf32>, vector<2x128xf32> -> vector<2x128xf32>
    %c0_12 = arith.constant 0 : index
    %c0_13 = arith.constant 0 : index
    %14 = vector.load %arg5[%c0_12, %c0_13] : memref<1x128xf32, #tpu.memory_space<vmem>>, vector<1x128xf32>
    %15 = vector.broadcast %14 : vector<1x128xf32> to vector<2x128xf32>
    %16 = arith.addf %13, %15 : vector<2x128xf32>
    %c0_14 = arith.constant 0 : index
    %c0_15 = arith.constant 0 : index
    %17 = vector.load %arg6[%c0_14, %c0_15] : memref<2x128xf32, #tpu.memory_space<vmem>>, vector<2x128xf32>
    tpu.vector_store %arg6[%c0_14, %c0_15], %16 {strides = array<i32>} : memref<2x128xf32, #tpu.memory_space<vmem>>, vector<2x128xf32>,
    return
  }
}

</mosaic_0001>

<llo_original>
// kernel: bert_textcnn_forward.1
$region0: #{bert_textcnn_forward.1}
  #allocation0 [shape = 'u32[]', space=smem, size = 0x4, offset = 0x4, fixed_abs, tag = 'smem constant byte address 0x4 - core index']
  #allocation1 [shape = 'u32[144,128]{1,0:T(1,128)}', space=vmem, size = 0x12000, scoped, tag = 'internal scratch']
  %s0 = inlined_call_operand.vmem [shape: f32[32,128], index: 0, kind: input, shape index: {}]
  %s1 = inlined_call_operand.vmem [shape: f32[128,128], index: 1, kind: input, shape index: {}]
  %s2 = inlined_call_operand.vmem [shape: f32[1,128], index: 2, kind: input, shape index: {}]
  %s3 = inlined_call_operand.vmem [shape: f32[32,128], index: 3, kind: input, shape index: {}]
  %s4 = inlined_call_operand.vmem [shape: f32[128,128], index: 4, kind: input, shape index: {}]
  %s5 = inlined_call_operand.vmem [shape: f32[1,128], index: 5, kind: input, shape index: {}]
  %s6 = inlined_call_operand.hbm [shape: f32[2,128], index: 6, kind: output, shape index: {}]
  %s7 = sld [smem:[#allocation0]]
  $region34: #{bert_textcnn_forward.1} parent=0
    _
  %s9 = ssub.s32 1, %s7
  %s10 = scalar_select 0, %s9, %s7
  $region1: #{bert_textcnn_forward.1} parent=0
    #allocation2 [shape = 'u8[1024]{0}', space=vmem, size = 0x400, scoped, tag = 'output window, operand 0, single buffered']
    #allocation3 [shape = 's32[1]{0}', space=sflag, size = 0x4, scoped, tag = 'scoped memory for bert_textcnn_forward.1']
    %11 = vsyncpa [#allocation3], 0
    // Predicated region
    $region2: #{bert_textcnn_forward.1} parent=1 // pred_check
      _
    $region3: #{bert_textcnn_forward.1} parent=1 // pred_check_branch
      %13 = sbr.rel (0) target = $region5
    $region4: #{bert_textcnn_forward.1} parent=1 // pred_region
      _
    $region5: #{bert_textcnn_forward.1} parent=1 // pred_fallthru
      _
    // Predicated region
    $region6: #{bert_textcnn_forward.1} parent=1 // pred_check
      _
    $region7: #{bert_textcnn_forward.1} parent=1 // pred_check_branch
      %15 = sbr.rel (0) target = $region9
    $region8: #{bert_textcnn_forward.1} parent=1 // pred_region
      _
    $region9: #{bert_textcnn_forward.1} parent=1 // pred_fallthru
      _
    // Predicated region
    $region10: #{bert_textcnn_forward.1} parent=1 // pred_check
      _
    $region11: #{bert_textcnn_forward.1} parent=1 // pred_check_branch
      %17 = sbr.rel (0) target = $region13
    $region12: #{bert_textcnn_forward.1} parent=1 // pred_region
      _
    $region13: #{bert_textcnn_forward.1} parent=1 // pred_fallthru
      _
    // Predicated region
    $region14: #{bert_textcnn_forward.1} parent=1 // pred_check
      _
    $region15: #{bert_textcnn_forward.1} parent=1 // pred_check_branch
      %19 = sbr.rel (0) target = $region17
    $region16: #{bert_textcnn_forward.1} parent=1 // pred_region
      _
    $region17: #{bert_textcnn_forward.1} parent=1 // pred_fallthru
      _
    // Predicated region
    $region18: #{bert_textcnn_forward.1} parent=1 // pred_check
      _
    $region19: #{bert_textcnn_forward.1} parent=1 // pred_check_branch
      %21 = sbr.rel (0) target = $region21
    $region20: #{bert_textcnn_forward.1} parent=1 // pred_region
      _
    $region21: #{bert_textcnn_forward.1} parent=1 // pred_fallthru
      _
    // Predicated region
    $region22: #{bert_textcnn_forward.1} parent=1 // pred_check
      _
    $region23: #{bert_textcnn_forward.1} parent=1 // pred_check_branch
      %23 = sbr.rel (0) target = $region25
    $region24: #{bert_textcnn_forward.1} parent=1 // pred_region
      _
    $region25: #{bert_textcnn_forward.1} parent=1 // pred_fallthru
      _
    %v24 = vld [vmem:[%s0] sm:$0xff]
    %v25 = vld [vmem:[%s0 + $0x8] sm:$0xff]
    %v26 = vld [vmem:[%s0 + $0x10] sm:$0xff]
    %v27 = vld [vmem:[%s0 + $0x18] sm:$0xff]
    %v28 = vld [vmem:[%s1] sm:$0xff]
    %v29 = vld [vmem:[%s1 + $0x8] sm:$0xff]
    %v30 = vld [vmem:[%s1 + $0x10] sm:$0xff]
    %v31 = vld [vmem:[%s1 + $0x18] sm:$0xff]
    %v32 = vld [vmem:[%s1 + $0x20] sm:$0xff]
    %v33 = vld [vmem:[%s1 + $0x28] sm:$0xff]
    %v34 = vld [vmem:[%s1 + $0x30] sm:$0xff]
    %v35 = vld [vmem:[%s1 + $0x38] sm:$0xff]
    %v36 = vld [vmem:[%s1 + $0x40] sm:$0xff]
    %v37 = vld [vmem:[%s1 + $0x48] sm:$0xff]
    %v38 = vld [vmem:[%s1 + $0x50] sm:$0xff]
    %v39 = vld [vmem:[%s1 + $0x58] sm:$0xff]
    %v40 = vld [vmem:[%s1 + $0x60] sm:$0xff]
    %v41 = vld [vmem:[%s1 + $0x68] sm:$0xff]
    %v42 = vld [vmem:[%s1 + $0x70] sm:$0xff]
    %v43 = vld [vmem:[%s1 + $0x78] sm:$0xff]
    %v44 = vld [vmem:[%s2] sm:$0x1]
    %v46 = vlaneseq
    %v47 = vshrl.u32 %v46, 7
    %v48 = vsub.s32 0, %v47
    %v49 = vrot.slane %v44, %v48
    %51 = vmatprep.subr.mxu0 0.0
    %52 = vmatpush1.msra.mxu0 %v43
    %53 = vmatprep.subr.mxu0 0.0
    %54 = vmatpush1.msra.mxu0 %v42
    %55 = vmatprep.subr.mxu0 0.0
    %56 = vmatpush1.msra.mxu0 %v41
    %57 = vmatprep.subr.mxu0 0.0
    %58 = vmatpush1.msra.mxu0 %v40
    %59 = vmatprep.subr.mxu0 0.0
    %60 = vmatpush1.msra.mxu0 %v39
    %61 = vmatprep.subr.mxu0 0.0
    %62 = vmatpush1.msra.mxu0 %v38
    %63 = vmatprep.subr.mxu0 0.0
    %64 = vmatpush1.msra.mxu0 %v37
    %65 = vmatprep.subr.mxu0 0.0
    %66 = vmatpush1.msra.mxu0 %v36
    %67 = vmatprep.subr.mxu0 0.0
    %68 = vmatpush1.msra.mxu0 %v35
    %69 = vmatprep.subr.mxu0 0.0
    %70 = vmatpush1.msra.mxu0 %v34
    %71 = vmatprep.subr.mxu0 0.0
    %72 = vmatpush1.msra.mxu0 %v33
    %73 = vmatprep.subr.mxu0 0.0
    %74 = vmatpush1.msra.mxu0 %v32
    %75 = vmatprep.subr.mxu0 0.0
    %76 = vmatpush1.msra.mxu0 %v31
    %77 = vmatprep.subr.mxu0 0.0
    %78 = vmatpush1.msra.mxu0 %v30
    %79 = vmatprep.subr.mxu0 0.0
    %80 = vmatpush1.msra.mxu0 %v29
    %81 = vmatprep.subr.mxu0 0.0
    %82 = vmatpush1.msra.mxu0 %v28
    %83 = vmatprep.subr.mxu0 0.0
    %84 = vmatpush2.msra.mxu0 0.0
    %85 = vmatprep.subr.mxu0 0.0
    %86 = vmatpush2.msra.mxu0 0.0
    %87 = vmatprep.subr.mxu0 0.0
    %88 = vmatpush2.msra.mxu0 0.0
    %89 = vmatprep.subr.mxu0 0.0
    %90 = vmatpush2.msra.mxu0 0.0
    %91 = vmatprep.subr.mxu0 0.0
    %92 = vmatpush2.msra.mxu0 0.0
    %93 = vmatprep.subr.mxu0 0.0
    %94 = vmatpush2.msra.mxu0 0.0
    %95 = vmatprep.subr.mxu0 0.0
    %96 = vmatpush2.msra.mxu0 0.0
    %97 = vmatprep.subr.mxu0 0.0
    %98 = vmatpush2.msra.mxu0 0.0
    %99 = vmatprep.subr.mxu0 0.0
    %100 = vmatpush2.msra.mxu0 0.0
    %101 = vmatprep.subr.mxu0 0.0
    %102 = vmatpush2.msra.mxu0 0.0
    %103 = vmatprep.subr.mxu0 0.0
    %104 = vmatpush2.msra.mxu0 0.0
    %105 = vmatprep.subr.mxu0 0.0
    %106 = vmatpush2.msra.mxu0 0.0
    %107 = vmatprep.subr.mxu0 0.0
    %108 = vmatpush2.msra.mxu0 0.0
    %109 = vmatprep.subr.mxu0 0.0
    %110 = vmatpush2.msra.mxu0 0.0
    %111 = vmatprep.subr.mxu0 0.0
    %112 = vmatpush2.msra.mxu0 0.0
    %113 = vmatprep.subr.mxu0 0.0
    %114 = vmatpush2.msra.mxu0 0.0
    %115 = vmatprep.mubr.f32.mxu0 0.0
    %116 = vmatmul.mubr.f32.gmra.mxu0 %v24
    %v117 = vpop.f32.mrf.mxu0
    %v118 = vadd.f32 %v49, %v117
    %v119 = vpop.f32.mrf.mxu0
    %120 = vmatprep.mubr.f32.mxu0 0.0
    %121 = vmatmul.mubr.f32.gmra.mxu0 %v25
    %v122 = vpop.f32.mrf.mxu0
    %v123 = vadd.f32 %v49, %v122
    %v124 = vpop.f32.mrf.mxu0
    %125 = vmatprep.mubr.f32.mxu0 0.0
    %126 = vmatmul.mubr.f32.gmra.mxu0 %v26
    %v127 = vpop.f32.mrf.mxu0
    %v128 = vadd.f32 %v49, %v127
    %v129 = vpop.f32.mrf.mxu0
    %130 = vmatprep.mubr.f32.mxu0 0.0
    %131 = vmatmul.mubr.f32.gmra.mxu0 %v27
    %v132 = vpop.f32.mrf.mxu0
    %v133 = vadd.f32 %v49, %v132
    %v134 = vpop.f32.mrf.mxu0
    %135 = vdwg.mxu0
    %v136 = vmax.f32 %v118, 0.0
    %v137 = vmax.f32 %v123, 0.0
    %v138 = vmax.f32 %v128, 0.0
    %v139 = vmax.f32 %v133, 0.0
    %v140 = vld [vmem:[%s3] sm:$0xff]
    %v141 = vld [vmem:[%s3 + $0x8] sm:$0xff]
    %v142 = vld [vmem:[%s3 + $0x10] sm:$0xff]
    %v143 = vld [vmem:[%s3 + $0x18] sm:$0xff]
    %v144 = vmul.f32 %v136, %v140
    %v145 = vmul.f32 %v137, %v141
    %v146 = vmul.f32 %v138, %v142
    %v147 = vmul.f32 %v139, %v143
    %v148 = vmax.f32 %v144, %v145
    %v149 = vrot.slane %v148, 4
    %v150 = vmax.f32 %v148, %v149
    %v151 = vrot.slane %v150, 2
    %v152 = vmax.f32 %v150, %v151
    %v153 = vrot.slane %v152, 1
    %v154 = vmax.f32 %v152, %v153
    %v155 = vmax.f32 %v146, %v147
    %v156 = vrot.slane %v155, 4
    %v157 = vmax.f32 %v155, %v156
    %v158 = vrot.slane %v157, 2
    %v159 = vmax.f32 %v157, %v158
    %v160 = vrot.slane %v159, 1
    %v161 = vmax.f32 %v159, %v160
    %v162 = vld [vmem:[%s4] sm:$0xff]
    %v163 = vld [vmem:[%s4 + $0x8] sm:$0xff]
    %v164 = vld [vmem:[%s4 + $0x10] sm:$0xff]
    %v165 = vld [vmem:[%s4 + $0x18] sm:$0xff]
    %v166 = vld [vmem:[%s4 + $0x20] sm:$0xff]
    %v167 = vld [vmem:[%s4 + $0x28] sm:$0xff]
    %v168 = vld [vmem:[%s4 + $0x30] sm:$0xff]
    %v169 = vld [vmem:[%s4 + $0x38] sm:$0xff]
    %v170 = vld [vmem:[%s4 + $0x40] sm:$0xff]
    %v171 = vld [vmem:[%s4 + $0x48] sm:$0xff]
    %v172 = vld [vmem:[%s4 + $0x50] sm:$0xff]
    %v173 = vld [vmem:[%s4 + $0x58] sm:$0xff]
    %v174 = vld [vmem:[%s4 + $0x60] sm:$0xff]
    %v175 = vld [vmem:[%s4 + $0x68] sm:$0xff]
    %v176 = vld [vmem:[%s4 + $0x70] sm:$0xff]
    %v177 = vld [vmem:[%s4 + $0x78] sm:$0xff]
    %v178 = vld [vmem:[%s5] sm:$0x1]
    %v180 = vlaneseq
    %v181 = vshrl.u32 %v180, 7
    %v182 = vsub.s32 0, %v181
    %v183 = vrot.slane %v178, %v182
    %vm187 = vcmask 1041409
    %v188 = vsel %vm187, %v161, %v154
    %190 = vmatprep.subr.mxu0 0.0
    %191 = vmatpush1.msra.mxu0 %v177
    %192 = vmatprep.subr.mxu0 0.0
    %193 = vmatpush1.msra.mxu0 %v176
    %194 = vmatprep.subr.mxu0 0.0
    %195 = vmatpush1.msra.mxu0 %v175
    %196 = vmatprep.subr.mxu0 0.0
    %197 = vmatpush1.msra.mxu0 %v174
    %198 = vmatprep.subr.mxu0 0.0
    %199 = vmatpush1.msra.mxu0 %v173
    %200 = vmatprep.subr.mxu0 0.0
    %201 = vmatpush1.msra.mxu0 %v172
    %202 = vmatprep.subr.mxu0 0.0
    %203 = vmatpush1.msra.mxu0 %v171
    %204 = vmatprep.subr.mxu0 0.0
    %205 = vmatpush1.msra.mxu0 %v170
    %206 = vmatprep.subr.mxu0 0.0
    %207 = vmatpush1.msra.mxu0 %v169
    %208 = vmatprep.subr.mxu0 0.0
    %209 = vmatpush1.msra.mxu0 %v168
    %210 = vmatprep.subr.mxu0 0.0
    %211 = vmatpush1.msra.mxu0 %v167
    %212 = vmatprep.subr.mxu0 0.0
    %213 = vmatpush1.msra.mxu0 %v166
    %214 = vmatprep.subr.mxu0 0.0
    %215 = vmatpush1.msra.mxu0 %v165
    %216 = vmatprep.subr.mxu0 0.0
    %217 = vmatpush1.msra.mxu0 %v164
    %218 = vmatprep.subr.mxu0 0.0
    %219 = vmatpush1.msra.mxu0 %v163
    %220 = vmatprep.subr.mxu0 0.0
    %221 = vmatpush1.msra.mxu0 %v162
    %222 = vmatprep.subr.mxu0 0.0
    %223 = vmatpush2.msra.mxu0 0.0
    %224 = vmatprep.subr.mxu0 0.0
    %225 = vmatpush2.msra.mxu0 0.0
    %226 = vmatprep.subr.mxu0 0.0
    %227 = vmatpush2.msra.mxu0 0.0
    %228 = vmatprep.subr.mxu0 0.0
    %229 = vmatpush2.msra.mxu0 0.0
    %230 = vmatprep.subr.mxu0 0.0
    %231 = vmatpush2.msra.mxu0 0.0
    %232 = vmatprep.subr.mxu0 0.0
    %233 = vmatpush2.msra.mxu0 0.0
    %234 = vmatprep.subr.mxu0 0.0
    %235 = vmatpush2.msra.mxu0 0.0
    %236 = vmatprep.subr.mxu0 0.0
    %237 = vmatpush2.msra.mxu0 0.0
    %238 = vmatprep.subr.mxu0 0.0
    %239 = vmatpush2.msra.mxu0 0.0
    %240 = vmatprep.subr.mxu0 0.0
    %241 = vmatpush2.msra.mxu0 0.0
    %242 = vmatprep.subr.mxu0 0.0
    %243 = vmatpush2.msra.mxu0 0.0
    %244 = vmatprep.subr.mxu0 0.0
    %245 = vmatpush2.msra.mxu0 0.0
    %246 = vmatprep.subr.mxu0 0.0
    %247 = vmatpush2.msra.mxu0 0.0
    %248 = vmatprep.subr.mxu0 0.0
    %249 = vmatpush2.msra.mxu0 0.0
    %250 = vmatprep.subr.mxu0 0.0
    %251 = vmatpush2.msra.mxu0 0.0
    %252 = vmatprep.subr.mxu0 0.0
    %253 = vmatpush2.msra.mxu0 0.0
    %254 = vmatprep.mubr.f32.mxu0 0.0
    %255 = vmatmul.mubr.f32.gmra.mxu0 %v188
    %v256 = vpop.f32.mrf.mxu0
    %v257 = vadd.f32 %v183, %v256
    %v258 = vpop.f32.mrf.mxu0
    %259 = vdwg.mxu0
    %260 = vst [vmem:[#allocation2] sm:$0x3] %v257
    // Predicated region
    $region26: #{bert_textcnn_forward.1} parent=1 // pred_check
      _
    $region27: #{bert_textcnn_forward.1} parent=1 // pred_check_branch
      %262 = sbr.rel (0) target = $region29
    $region28: #{bert_textcnn_forward.1} parent=1 // pred_region
      %s264 = ssub.s32 32, 32
      %265 = vsyncadd [#allocation3], %s264
      %s267 = sshll.u32 [#allocation2], 4
      %s268 = int_to_ptr.vmem [resolvable:$true] %s267
      %270 = dma.vmem_to_hbm [thread:$0]  %s268, 32, %s6, [#allocation3]
    $region29: #{bert_textcnn_forward.1} parent=1 // pred_fallthru
      _
    // Predicated region
    $region30: #{bert_textcnn_forward.1} parent=1 // pred_check
      _
    $region31: #{bert_textcnn_forward.1} parent=1 // pred_check_branch
      %272 = sbr.rel (0) target = $region33
    $region32: #{bert_textcnn_forward.1} parent=1 // pred_region
      %273 = dma.done [#allocation3], 32
    $region33: #{bert_textcnn_forward.1} parent=1 // pred_fallthru
      _
    %274 = vsyncpa [#allocation3], 1

</llo_original>
